<compile_context>
chip_gen: v7x
topology: tpu7x:2x2x1
jax: 0.10.0
libtpu: 0.0.40
codegen_flags: <defaults>
</compile_context>

<pallas_src>
import functools

import jax
import jax.numpy as jnp
from jax.experimental import pallas as pl
from jax.experimental.pallas import tpu as pltpu


# --------------------------------------------------------------------------- #
# Helpers
# --------------------------------------------------------------------------- #
def _round_up(x, m):
    return (x + m - 1) // m * m


def _cdiv(a, b):
    return -(-a // b)


def _tpu_generation():
    """Return 'v4'/'v5'/'v6'/'v7'/... or 'unknown'."""
    try:
        kind = jax.devices()[0].device_kind.lower()
    except Exception:
        return "unknown"
    for tag in ("v7", "v6", "v5", "v4", "v3", "v2"):
        if tag in kind:
            return tag
    return "unknown"


# Worst-case |a*b| for int8 x int8 is 128*128; K above this bound could
# overflow the int32 accumulator -> fall back to the f32 path.
_INT32_SAFE_K = (2**31 - 1) // (128 * 128)


def _use_int8_mxu(gen, K):
    """Native int8 MXU path on v4/v5/v6; bf16-cast path on v7x / unknown."""
    return gen in ("v4", "v5", "v6") and K <= _INT32_SAFE_K


def _select_tiles(K, N, gen):
    """Generation-specific tile defaults, clamped to the problem size.

    Returns (default_tm, tn, tk); tm is finalized per-call from M.
    """
    if gen == "v5":
        # v5e: only 1 vector-store slot -> keep the accumulator tile modest
        # and grow tk instead (fewer acc read-modify-write passes per tile).
        d_tm, d_tn, d_tk = 256, 512, 2048
    elif gen == "v6":
        # 128 MiB VMEM; tn multiple of 256 for the 2x256^2 MXU and lane-dense
        # unmasked output stores; ~10 MiB double-buffered.
        d_tm, d_tn, d_tk = 512, 1024, 2048
    elif gen == "v7":
        # 64 MiB VMEM and extra bf16 cast temporaries each step -> smaller tk.
        d_tm, d_tn, d_tk = 256, 1024, 1024
    else:
        d_tm, d_tn, d_tk = 256, 512, 1024

    tn = min(d_tn, _round_up(N, 128))
    tk = min(d_tk, _round_up(K, 128))

    if gen == "v7":
        # Two TensorCores per chip: make sure at least one "parallel" grid axis
        # has >=2 blocks even when M collapses to a single block (decode).
        while _cdiv(N, tn) < 2 and tn > 128:
            tn = max(128, _round_up(tn // 2, 128))

    return d_tm, tn, tk


def _vmem_limit_bytes(tm, tn, tk, out_bytes, int_path, gen):
    """Scoped-VMEM request from the actual buffer math (+ headroom)."""
    need = 2 * (tm * tk + tk * tn)          # double-buffered int8 A/B tiles
    need += 2 * (tm * 4 + tn * 4)           # double-buffered scale tiles
    need += 2 * tm * tn * out_bytes         # double-buffered output tile
    need += tm * tn * 4                     # accumulator scratch (i32/f32)
    if not int_path:
        need += (tm * tk + tk * tn) * 2     # bf16 cast temporaries (v7x path)
    need = int(need * 1.5) + (4 << 20)      # compiler temporaries / headroom
    phys = (64 << 20) if gen in ("v7", "unknown") else (128 << 20)
    return int(min(max(need, 32 << 20), int(phys * 0.85)))


# --------------------------------------------------------------------------- #
# Kernel
# --------------------------------------------------------------------------- #
def _scaled_mm_kernel(a_ref, b_ref, sa_ref, sb_ref, o_ref, acc_ref, *, int_path):
    """One (tm, tn) output tile; K is the innermost ("arbitrary") grid axis."""
    k = pl.program_id(2)

    @pl.when(k == 0)
    def _init():
        acc_ref[...] = jnp.zeros_like(acc_ref)

    if int_path:
        # Native int8 x int8 -> int32 on the MXU (exact accumulation).
        acc_ref[...] += jnp.dot(
            a_ref[...], b_ref[...], preferred_element_type=jnp.int32
        )
    else:
        # v7x: no integer MXU. int8 -> bf16 is exact; accumulate in f32.
        acc_ref[...] += jnp.dot(
            a_ref[...].astype(jnp.bfloat16),
            b_ref[...].astype(jnp.bfloat16),
            preferred_element_type=jnp.float32,
        )

    @pl.when(k == pl.num_programs(2) - 1)
    def _finalize():
        # Scales applied once per output tile, never inside the K loop.
        acc = acc_ref[...].astype(jnp.float32)
        o_ref[...] = (acc * sa_ref[...] * sb_ref[...]).astype(o_ref.dtype)


@functools.partial(
    jax.jit,
    static_argnames=("out_dtype", "tm", "tn", "tk", "int_path", "gen", "M", "N"),
)
def _scaled_mm_padded(a, b, scale_a, scale_b, *, out_dtype, tm, tn, tk,
                      int_path, gen, M, N):
    """Core pallas_call on already tile-aligned (padded) operands."""
    Mp, Kp = a.shape
    _, Np = b.shape
    grid = (Mp // tm, Np // tn, Kp // tk)
    acc_dtype = jnp.int32 if int_path else jnp.float32
    out_elt = jnp.dtype(out_dtype).itemsize

    # Real HBM traffic: A is re-streamed once per N-block, B once per M-block.
    cost = pl.CostEstimate(
        flops=2 * Mp * Np * Kp,
        bytes_accessed=(Mp * Kp * grid[1]
                        + Kp * Np * grid[0]
                        + Mp * Np * out_elt
                        + 4 * (Mp * grid[1] + Np * grid[0])),
        transcendentals=0,
    )

    out = pl.pallas_call(
        functools.partial(_scaled_mm_kernel, int_path=int_path),
        out_shape=jax.ShapeDtypeStruct((Mp, Np), out_dtype),
        grid_spec=pltpu.PrefetchScalarGridSpec(
            num_scalar_prefetch=0,
            grid=grid,
            in_specs=[
                pl.BlockSpec((tm, tk), lambda i, j, k: (i, k)),   # A tile
                pl.BlockSpec((tk, tn), lambda i, j, k: (k, j)),   # B tile
                pl.BlockSpec((tm, 1), lambda i, j, k: (i, 0)),    # row scales
                pl.BlockSpec((1, tn), lambda i, j, k: (0, j)),    # col scales
            ],
            out_specs=pl.BlockSpec((tm, tn), lambda i, j, k: (i, j)),
            scratch_shapes=[pltpu.VMEM((tm, tn), acc_dtype)],
        ),
        compiler_params=pltpu.CompilerParams(
            dimension_semantics=("parallel", "parallel", "arbitrary"),
            vmem_limit_bytes=_vmem_limit_bytes(tm, tn, tk, out_elt, int_path, gen),
        ),
        cost_estimate=cost,
    )(a, b, scale_a, scale_b)

    if (Mp, Np) != (M, N):
        out = out[:M, :N]
    return out


# --------------------------------------------------------------------------- #
# Public API
# --------------------------------------------------------------------------- #
def cutlass_scaled_mm(a, b, scale_a, scale_b, out_dtype=jnp.bfloat16,
                      tm=None, tn=None, tk=None):
    """Generic entry point (pads everything per call)."""
    M, K = a.shape
    K2, N = b.shape
    assert K == K2
    assert scale_a.shape == (M, 1)
    assert scale_b.shape == (1, N)

    gen = _tpu_generation()
    int_path = _use_int8_mxu(gen, K)
    d_tm, d_tn, d_tk = _select_tiles(K, N, gen)
    tm = tm if tm is not None else min(d_tm, _round_up(M, 32))
    tn = tn if tn is not None else d_tn
    tk = tk if tk is not None else d_tk

    Mp, Np, Kp = _round_up(M, tm), _round_up(N, tn), _round_up(K, tk)
    if (Mp, Kp) != (M, K):
        a = jnp.pad(a, ((0, Mp - M), (0, Kp - K)))
    if (Kp, Np) != (K, N):
        b = jnp.pad(b, ((0, Kp - K), (0, Np - N)))
    if Mp != M:
        scale_a = jnp.pad(scale_a, ((0, Mp - M), (0, 0)))
    if Np != N:
        scale_b = jnp.pad(scale_b, ((0, 0), (0, Np - N)))

    return _scaled_mm_padded(a, b, scale_a, scale_b,
                             out_dtype=jnp.dtype(out_dtype), tm=tm, tn=tn,
                             tk=tk, int_path=int_path, gen=gen, M=M, N=N)


class CutlassLayer:
    """JAX mirror of the PyTorch CutlassLayer module.

    Weight and scale padding is hoisted into __init__ (one-time cost); only
    the activation (and its row scales, already held by the layer) needs
    per-call padding.
    """

    def __init__(self, b, scale_a, scale_b, out_dtype):
        K, N = b.shape
        M = scale_a.shape[0]
        assert scale_a.shape == (M, 1)
        assert scale_b.shape == (1, N)

        self._gen = _tpu_generation()
        self._int_path = _use_int8_mxu(self._gen, K)
        d_tm, tn, tk = _select_tiles(K, N, self._gen)
        tm = min(d_tm, _round_up(M, 32))
        self._tm, self._tn, self._tk = tm, tn, tk
        self._M, self._K, self._N = M, K, N
        Mp, Kp, Np = _round_up(M, tm), _round_up(K, tk), _round_up(N, tn)
        self._Mp, self._Kp, self._Np = Mp, Kp, Np

        # One-time weight / scale padding (never repeated in the forward path).
        self.b = jnp.pad(b, ((0, Kp - K), (0, Np - N))) if (Kp, Np) != (K, N) else b
        self.scale_b = (jnp.pad(scale_b, ((0, 0), (0, Np - N)))
                        if Np != N else scale_b)
        self.scale_a = (jnp.pad(scale_a, ((0, Mp - M), (0, 0)))
                        if Mp != M else scale_a)
        self.out_dtype = jnp.dtype(out_dtype)

    def __call__(self, a):
        M, K = a.shape
        assert (M, K) == (self._M, self._K)
        if (self._Mp, self._Kp) != (M, K):
            a = jnp.pad(a, ((0, self._Mp - M), (0, self._Kp - K)))
        return _scaled_mm_padded(
            a, self.b, self.scale_a, self.scale_b,
            out_dtype=self.out_dtype, tm=self._tm, tn=self._tn, tk=self._tk,
            int_path=self._int_path, gen=self._gen, M=self._M, N=self._N)


# --------------------------------------------------------------------------- #
# Self-test
# --------------------------------------------------------------------------- #
if __name__ == "__main__":
    key = jax.random.PRNGKey(0)

    def run_case(M, K, N, case_key):
        k_a, k_b, k_sa, k_sb = jax.random.split(case_key, 4)
        a = jax.random.randint(k_a, (M, K), -128, 128,
                               dtype=jnp.int32).astype(jnp.int8)
        b = jax.random.randint(k_b, (K, N), -128, 128,
                               dtype=jnp.int32).astype(jnp.int8)
        scale_a = jax.random.uniform(k_sa, (M, 1), jnp.float32, 1e-3, 1e-1)
        scale_b = jax.random.uniform(k_sb, (1, N), jnp.float32, 1e-3, 1e-1)

        layer = CutlassLayer(b, scale_a, scale_b, jnp.bfloat16)
        out = jax.block_until_ready(layer(a))

        # Pure-JAX reference. f32 accumulation is exact here because the
        # worst-case partial sums (K * 128 * 128) stay below 2^24 for K <= ~1k;
        # this is a limitation of the test reference, not of the kernel.
        ref = (scale_a
               * jnp.dot(a.astype(jnp.float32), b.astype(jnp.float32))
               * scale_b).astype(jnp.bfloat16)
        assert out.shape == (M, N) and out.dtype == jnp.bfloat16
        assert jnp.allclose(out.astype(jnp.float32), ref.astype(jnp.float32),
                            rtol=2e-2, atol=2e-2), (M, K, N)

    key1, key2 = jax.random.split(key)
    run_case(32, 256, 128, key1)    # tile-aligned small case
    run_case(48, 384, 200, key2)    # non-aligned case (exercises padding path)

    print("KERNEL_OK")
</pallas_src>

<mosaic_0001>
module attributes {stable_mosaic.version = 11 : i64} {
  func.func @_scaled_mm_kernel(%arg0: i32, %arg1: i32, %arg2: i32, %arg3: memref<32x256xi8, #tpu.memory_space<vmem>>, %arg4: memref<256x128xi8, #tpu.memory_space<vmem>>, %arg5: memref<32x1xf32, #tpu.memory_space<vmem>>, %arg6: memref<1x128xf32, #tpu.memory_space<vmem>>, %arg7: memref<32x128xbf16, #tpu.memory_space<vmem>>, %arg8: memref<32x128xf32, #tpu.memory_space<vmem>>) attributes {dimension_semantics = [#tpu.dimension_semantics<parallel>, #tpu.dimension_semantics<parallel>, #tpu.dimension_semantics<arbitrary>], iteration_bounds = array<i64: 1, 1, 1>, scalar_prefetch = 0 : i64, scratch_operands = 1 : i64, tpu.core_type = #tpu.core_type<tc>, window_params = [{transform_indices = @transform_0, window_bounds = array<i64: 32, 256>}, {transform_indices = @transform_1, window_bounds = array<i64: 256, 128>}, {transform_indices = @transform_2, window_bounds = array<i64: 32, 1>}, {transform_indices = @transform_3, window_bounds = array<i64: 1, 128>}, {transform_indices = @transform_4, window_bounds = array<i64: 32, 128>}]} {
    %c0_i32 = arith.constant 0 : i32
    %0 = arith.cmpi eq, %arg2, %c0_i32 : i32
    %1 = arith.extui %0 : i1 to i32
    %c0_i32_0 = arith.constant 0 : i32
    %2 = arith.cmpi ne, %1, %c0_i32_0 : i32
    scf.if %2 {
      %cst_10 = arith.constant 0.000000e+00 : f32
      %14 = vector.broadcast %cst_10 : f32 to vector<32x128xf32>
      %c0_11 = arith.constant 0 : index
      %c0_12 = arith.constant 0 : index
      %15 = vector.load %arg8[%c0_11, %c0_12] : memref<32x128xf32, #tpu.memory_space<vmem>>, vector<32x128xf32>
      tpu.vector_store %arg8[%c0_11, %c0_12], %14 {strides = array<i32>} : memref<32x128xf32, #tpu.memory_space<vmem>>, vector<32x128xf32>,
    } else {
    }
    %c0 = arith.constant 0 : index
    %c0_1 = arith.constant 0 : index
    %3 = vector.load %arg8[%c0, %c0_1] : memref<32x128xf32, #tpu.memory_space<vmem>>, vector<32x128xf32>
    %c0_2 = arith.constant 0 : index
    %c0_3 = arith.constant 0 : index
    %4 = vector.load %arg3[%c0_2, %c0_3] : memref<32x256xi8, #tpu.memory_space<vmem>>, vector<32x256xi8>
    %5 = arith.sitofp %4 : vector<32x256xi8> to vector<32x256xbf16>
    %c0_4 = arith.constant 0 : index
    %c0_5 = arith.constant 0 : index
    %6 = vector.load %arg4[%c0_4, %c0_5] : memref<256x128xi8, #tpu.memory_space<vmem>>, vector<256x128xi8>
    %7 = arith.sitofp %6 : vector<256x128xi8> to vector<256x128xbf16>
    %cst = arith.constant dense<0.000000e+00> : vector<32x128xf32>
    %8 = tpu.matmul %5, %7, %cst {dimension_numbers = #tpu.dot_dimension_numbers<[1], [0], [0], [1], [0, 0, 1, 1], [], []>} : vector<32x256xbf16>, vector<256x128xbf16>, vector<32x128xf32> -> vector<32x128xf32>
    %9 = arith.addf %3, %8 : vector<32x128xf32>
    %c0_6 = arith.constant 0 : index
    %c0_7 = arith.constant 0 : index
    %10 = vector.load %arg8[%c0_6, %c0_7] : memref<32x128xf32, #tpu.memory_space<vmem>>, vector<32x128xf32>
    tpu.vector_store %arg8[%c0_6, %c0_7], %9 {strides = array<i32>} : memref<32x128xf32, #tpu.memory_space<vmem>>, vector<32x128xf32>,
    %c0_i32_8 = arith.constant 0 : i32
    %11 = arith.cmpi eq, %arg2, %c0_i32_8 : i32
    %12 = arith.extui %11 : i1 to i32
    %c0_i32_9 = arith.constant 0 : i32
    %13 = arith.cmpi ne, %12, %c0_i32_9 : i32
    scf.if %13 {
      %c0_10 = arith.constant 0 : index
      %c0_11 = arith.constant 0 : index
      %14 = vector.load %arg8[%c0_10, %c0_11] : memref<32x128xf32, #tpu.memory_space<vmem>>, vector<32x128xf32>
      %c0_12 = arith.constant 0 : index
      %c0_13 = arith.constant 0 : index
      %15 = vector.load %arg5[%c0_12, %c0_13] : memref<32x1xf32, #tpu.memory_space<vmem>>, vector<32x1xf32>
      %16 = vector.broadcast %15 : vector<32x1xf32> to vector<32x128xf32>
      %17 = arith.mulf %14, %16 : vector<32x128xf32>
      %c0_14 = arith.constant 0 : index
      %c0_15 = arith.constant 0 : index
      %18 = vector.load %arg6[%c0_14, %c0_15] : memref<1x128xf32, #tpu.memory_space<vmem>>, vector<1x128xf32>
      %19 = vector.broadcast %18 : vector<1x128xf32> to vector<32x128xf32>
      %20 = arith.mulf %17, %19 : vector<32x128xf32>
      %21 = arith.truncf %20 : vector<32x128xf32> to vector<32x128xbf16>
      %c0_16 = arith.constant 0 : index
      %c0_17 = arith.constant 0 : index
      %22 = vector.load %arg7[%c0_16, %c0_17] : memref<32x128xbf16, #tpu.memory_space<vmem>>, vector<32x128xbf16>
      tpu.vector_store %arg7[%c0_16, %c0_17], %21 {strides = array<i32>} : memref<32x128xbf16, #tpu.memory_space<vmem>>, vector<32x128xbf16>,
    } else {
    }
    return
  }
  func.func @transform_0(%arg0: i32, %arg1: i32, %arg2: i32) -> (i32, i32) {
    %c0_i32 = arith.constant 0 : i32
    return %arg0, %arg2 : i32, i32
  }
  func.func @transform_1(%arg0: i32, %arg1: i32, %arg2: i32) -> (i32, i32) {
    %c0_i32 = arith.constant 0 : i32
    return %arg2, %arg1 : i32, i32
  }
  func.func @transform_2(%arg0: i32, %arg1: i32, %arg2: i32) -> (i32, i32) {
    %c0_i32 = arith.constant 0 : i32
    %c0_i32_0 = arith.constant 0 : i32
    return %arg0, %c0_i32 : i32, i32
  }
  func.func @transform_3(%arg0: i32, %arg1: i32, %arg2: i32) -> (i32, i32) {
    %c0_i32 = arith.constant 0 : i32
    %c0_i32_0 = arith.constant 0 : i32
    return %c0_i32, %arg1 : i32, i32
  }
  func.func @transform_4(%arg0: i32, %arg1: i32, %arg2: i32) -> (i32, i32) {
    %c0_i32 = arith.constant 0 : i32
    return %arg0, %arg1 : i32, i32
  }
}

</mosaic_0001>

<llo_original>
// kernel: _scaled_mm_padded.1
$region0: #{_scaled_mm_padded.1}
  #allocation0 [shape = 'u32[]', space=smem, size = 0x4, offset = 0x4, fixed_abs, tag = 'smem constant byte address 0x4 - core index']
  #allocation1 [shape = 'u32[144,128]{1,0:T(1,128)}', space=vmem, size = 0x12000, scoped, tag = 'internal scratch']
  #allocation2 [shape = 'f32[32,128]{1,0:T(8,128)}', space=vmem, size = 0x4000, scoped, tag = 'scratch operand']
  %s0 = inlined_call_operand.vmem [shape: s8[32,256], index: 0, kind: input, shape index: {}]
  %s1 = inlined_call_operand.hbm [shape: s8[256,128], index: 1, kind: input, shape index: {}]
  %s2 = inlined_call_operand.vmem [shape: f32[32,1], index: 2, kind: input, shape index: {}]
  %s3 = inlined_call_operand.vmem [shape: f32[1,128], index: 3, kind: input, shape index: {}]
  %s4 = inlined_call_operand.hbm [shape: bf16[32,128], index: 4, kind: output, shape index: {}]
  %s5 = sld [smem:[#allocation0]]
  $region38: #{_scaled_mm_padded.1} parent=0
    _
  %s7 = ssub.s32 1, %s5
  %s8 = scalar_select 0, %s7, %s5
  $region1: #{_scaled_mm_padded.1} parent=0
    #allocation3 [shape = 'u8[32768]{0}', space=vmem, size = 0x8000, scoped, tag = 'input window, operand 1, single buffered']
    #allocation4 [shape = 's32[1]{0}', space=sflag, size = 0x4, scoped, tag = 'scoped memory for _scaled_mm_padded.1']
    #allocation5 [shape = 's32[1]{0}', space=sflag, size = 0x4, scoped, tag = 'scoped memory for _scaled_mm_padded.1']
    #allocation6 [shape = 'u8[8192]{0}', space=vmem, size = 0x2000, scoped, tag = 'output window, operand 0, single buffered']
    %9 = vsyncpa [#allocation4], 0
    %10 = vsyncpa [#allocation5], 0
    // Predicated region
    $region2: #{_scaled_mm_padded.1} parent=1 // pred_check
      _
    $region3: #{_scaled_mm_padded.1} parent=1 // pred_check_branch
      %12 = sbr.rel (0) target = $region5
    $region4: #{_scaled_mm_padded.1} parent=1 // pred_region
      _
    $region5: #{_scaled_mm_padded.1} parent=1 // pred_fallthru
      _
    // Predicated region
    $region6: #{_scaled_mm_padded.1} parent=1 // pred_check
      _
    $region7: #{_scaled_mm_padded.1} parent=1 // pred_check_branch
      %14 = sbr.rel (0) target = $region9
    $region8: #{_scaled_mm_padded.1} parent=1 // pred_region
      %s16 = ssub.s32 1024, 1024
      %17 = vsyncadd [#allocation4], %s16
      %s18 = sshll.u32 [#allocation3], 4
      %s19 = int_to_ptr.vmem [resolvable:$true] %s18
      %24 = dma.hbm_to_vmem [thread:$0]  %s1, 1024, %s19, [#allocation4], 128, 128, 8
    $region9: #{_scaled_mm_padded.1} parent=1 // pred_fallthru
      _
    // Predicated region
    $region10: #{_scaled_mm_padded.1} parent=1 // pred_check
      _
    $region11: #{_scaled_mm_padded.1} parent=1 // pred_check_branch
      %26 = sbr.rel (0) target = $region13
    $region12: #{_scaled_mm_padded.1} parent=1 // pred_region
      _
    $region13: #{_scaled_mm_padded.1} parent=1 // pred_fallthru
      _
    // Predicated region
    $region14: #{_scaled_mm_padded.1} parent=1 // pred_check
      _
    $region15: #{_scaled_mm_padded.1} parent=1 // pred_check_branch
      %28 = sbr.rel (0) target = $region17
    $region16: #{_scaled_mm_padded.1} parent=1 // pred_region
      _
    $region17: #{_scaled_mm_padded.1} parent=1 // pred_fallthru
      _
    // Predicated region
    $region18: #{_scaled_mm_padded.1} parent=1 // pred_check
      _
    $region19: #{_scaled_mm_padded.1} parent=1 // pred_check_branch
      %30 = sbr.rel (0) target = $region21
    $region20: #{_scaled_mm_padded.1} parent=1 // pred_region
      %31 = dma.done [#allocation4], 1024
    $region21: #{_scaled_mm_padded.1} parent=1 // pred_fallthru
      _
    %p33 = scmp.eq.s32.totalorder 0, 0
    // Predicated region
    $region22: #{_scaled_mm_padded.1} parent=1 // pred_check
      %p34 = pneg %p33
    $region23: #{_scaled_mm_padded.1} parent=1 // pred_check_branch
      %36 = sbr.rel (%p34) target = $region25
    $region24: #{_scaled_mm_padded.1} parent=1 // pred_region
      %37 = vst [vmem:[#allocation2] sm:$0xff] 0.0
      %38 = vst [vmem:[#allocation2 + $0x8] sm:$0xff] 0.0
      %39 = vst [vmem:[#allocation2 + $0x10] sm:$0xff] 0.0
      %40 = vst [vmem:[#allocation2 + $0x18] sm:$0xff] 0.0
    $region25: #{_scaled_mm_padded.1} parent=1 // pred_fallthru
      _
    %v41 = vld [vmem:[#allocation2] sm:$0xff]
    %v42 = vld [vmem:[#allocation2 + $0x8] sm:$0xff]
    %v43 = vld [vmem:[#allocation2 + $0x10] sm:$0xff]
    %v44 = vld [vmem:[#allocation2 + $0x18] sm:$0xff]
    %v45 = vld [vmem:[%s0] sm:$0xff]
    %v46 = vld [vmem:[%s0 + $0x8] sm:$0xff]
    %v47 = vunpack.c.l.s8.bf16 %v45
    %v48 = vunpack.c.l.s8.bf16 %v46
    %v49 = vunpack.c.h.s8.bf16 %v45
    %v50 = vunpack.c.h.s8.bf16 %v46
    %v51 = vld [vmem:[#allocation3] sm:$0xff]
    %v52 = vld [vmem:[#allocation3 + $0x8] sm:$0xff]
    %v53 = vld [vmem:[#allocation3 + $0x10] sm:$0xff]
    %v54 = vld [vmem:[#allocation3 + $0x18] sm:$0xff]
    %v55 = vld [vmem:[#allocation3 + $0x20] sm:$0xff]
    %v56 = vld [vmem:[#allocation3 + $0x28] sm:$0xff]
    %v57 = vld [vmem:[#allocation3 + $0x30] sm:$0xff]
    %v58 = vld [vmem:[#allocation3 + $0x38] sm:$0xff]
    %v59 = vunpack.c.l.s8.bf16 %v51
    %v60 = vunpack.c.h.s8.bf16 %v51
    %v61 = vunpack.c.l.s8.bf16 %v52
    %v62 = vunpack.c.h.s8.bf16 %v52
    %v63 = vunpack.c.l.s8.bf16 %v53
    %v64 = vunpack.c.h.s8.bf16 %v53
    %v65 = vunpack.c.l.s8.bf16 %v54
    %v66 = vunpack.c.h.s8.bf16 %v54
    %v67 = vunpack.c.l.s8.bf16 %v55
    %v68 = vunpack.c.h.s8.bf16 %v55
    %v69 = vunpack.c.l.s8.bf16 %v56
    %v70 = vunpack.c.h.s8.bf16 %v56
    %v71 = vunpack.c.l.s8.bf16 %v57
    %v72 = vunpack.c.h.s8.bf16 %v57
    %v73 = vunpack.c.l.s8.bf16 %v58
    %v74 = vunpack.c.h.s8.bf16 %v58
    %75 = vmatprep.subr.bf16.mxu0 0
    %76 = vmatpush1.bf16.msra.mxu0 %v59
    %77 = vmatprep.subr.bf16.mxu0 0
    %78 = vmatpush1.bf16.msra.mxu0 %v60
    %79 = vmatprep.subr.bf16.mxu0 0
    %80 = vmatpush1.bf16.msra.mxu0 %v61
    %81 = vmatprep.subr.bf16.mxu0 0
    %82 = vmatpush1.bf16.msra.mxu0 %v62
    %83 = vmatprep.subr.bf16.mxu0 0
    %84 = vmatpush1.bf16.msra.mxu0 %v63
    %85 = vmatprep.subr.bf16.mxu0 0
    %86 = vmatpush1.bf16.msra.mxu0 %v64
    %87 = vmatprep.subr.bf16.mxu0 0
    %88 = vmatpush1.bf16.msra.mxu0 %v65
    %89 = vmatprep.subr.bf16.mxu0 0
    %90 = vmatpush1.bf16.msra.mxu0 %v66
    %91 = vmatprep.subr.bf16.mxu0 0
    %92 = vmatpush1.bf16.msra.mxu0 %v67
    %93 = vmatprep.subr.bf16.mxu0 0
    %94 = vmatpush1.bf16.msra.mxu0 %v68
    %95 = vmatprep.subr.bf16.mxu0 0
    %96 = vmatpush1.bf16.msra.mxu0 %v69
    %97 = vmatprep.subr.bf16.mxu0 0
    %98 = vmatpush1.bf16.msra.mxu0 %v70
    %99 = vmatprep.subr.bf16.mxu0 0
    %100 = vmatpush1.bf16.msra.mxu0 %v71
    %101 = vmatprep.subr.bf16.mxu0 0
    %102 = vmatpush1.bf16.msra.mxu0 %v72
    %103 = vmatprep.subr.bf16.mxu0 0
    %104 = vmatpush1.bf16.msra.mxu0 %v73
    %105 = vmatprep.subr.bf16.mxu0 0
    %106 = vmatpush1.bf16.msra.mxu0 %v74
    %107 = vmatprep.mubr.bf16.mxu0 %v48
    %108 = vmatmul.mubr.bf16.gmra.mrb[0].mxu0 %v47
    %v109 = vpop.f32.mrb[0].mxu0
    %v110 = vadd.f32 0.0, %v109
    %v111 = vpop.f32.mrb[0].mxu0
    %v112 = vpop.f32.mrb[0].mxu0
    %v113 = vadd.f32 0.0, %v112
    %v114 = vpop.f32.mrb[0].mxu0
    %115 = vmatprep.mubr.bf16.mxu0 %v50
    %116 = vmatmul.mubr.bf16.gmra.mrb[0].mxu0 %v49
    %v117 = vpop.f32.mrb[0].mxu0
    %v118 = vadd.f32 0.0, %v117
    %v119 = vpop.f32.mrb[0].mxu0
    %v120 = vpop.f32.mrb[0].mxu0
    %v121 = vadd.f32 0.0, %v120
    %v122 = vpop.f32.mrb[0].mxu0
    %123 = vdwg.mxu0
    %v124 = vadd.f32 %v41, %v110
    %v125 = vadd.f32 %v42, %v113
    %v126 = vadd.f32 %v43, %v118
    %v127 = vadd.f32 %v44, %v121
    %128 = vst [vmem:[#allocation2] sm:$0xff] %v124
    %129 = vst [vmem:[#allocation2 + $0x8] sm:$0xff] %v125
    %130 = vst [vmem:[#allocation2 + $0x10] sm:$0xff] %v126
    %131 = vst [vmem:[#allocation2 + $0x18] sm:$0xff] %v127
    // Predicated region
    $region26: #{_scaled_mm_padded.1} parent=1 // pred_check
      %p132 = pneg %p33
    $region27: #{_scaled_mm_padded.1} parent=1 // pred_check_branch
      %134 = sbr.rel (%p132) target = $region29
    $region28: #{_scaled_mm_padded.1} parent=1 // pred_region
      %v135 = vld [vmem:[#allocation2] sm:$0xff]
      %v136 = vld [vmem:[#allocation2 + $0x8] sm:$0xff]
      %v137 = vld [vmem:[#allocation2 + $0x10] sm:$0xff]
      %v138 = vld [vmem:[#allocation2 + $0x18] sm:$0xff]
      %v139 = vld [vmem:[%s2] sm:$0xff]
      %v140 = vld [vmem:[%s2 + $0x8] sm:$0xff]
      %v141 = vld [vmem:[%s2 + $0x10] sm:$0xff]
      %v142 = vld [vmem:[%s2 + $0x18] sm:$0xff]
      %144 = vset.pattern.permute.xlu0 0
      %145 = vperm.xlu0 %144, %v139
      %v146 = vpop.permute.xlu0 %145
      %149 = vset.pattern.permute.xlu0 0
      %150 = vperm.xlu0 %149, %v140
      %v151 = vpop.permute.xlu0 %150
      %154 = vset.pattern.permute.xlu0 0
      %155 = vperm.xlu0 %154, %v141
      %v156 = vpop.permute.xlu0 %155
      %159 = vset.pattern.permute.xlu0 0
      %160 = vperm.xlu0 %159, %v142
      %v161 = vpop.permute.xlu0 %160
      %v163 = vmul.f32 %v135, %v146
      %v164 = vmul.f32 %v136, %v151
      %v165 = vmul.f32 %v137, %v156
      %v166 = vmul.f32 %v138, %v161
      %v167 = vld [vmem:[%s3] sm:$0x1]
      %v169 = vlaneseq
      %v170 = vshrl.u32 %v169, 7
      %v171 = vsub.s32 0, %v170
      %v172 = vrot.slane %v167, %v171
      %v174 = vmul.f32 %v163, %v172
      %v175 = vmul.f32 %v164, %v172
      %v176 = vmul.f32 %v165, %v172
      %v177 = vmul.f32 %v166, %v172
      %v178 = vpack.c.bf16 %v175, %v174
      %v179 = vpack.c.bf16 %v177, %v176
      %v182 = vunpack.c.l.b16 %v178
      %v183 = vunpack.c.h.b16 %v178
      %v184 = vunpack.c.l.b16 %v179
      %v185 = vunpack.c.h.b16 %v179
      %v186 = vpack.c.b16 %v182, %v182
      %v187 = vpack.c.b16 %v183, %v183
      %v188 = vpack.c.b16 %v184, %v184
      %v189 = vpack.c.b16 %v185, %v185
      %194 = vst [vmem:[#allocation6] sm:$0xf] %v186
      %195 = vst [vmem:[#allocation6 + $0x4] sm:$0xf] %v187
      %196 = vst [vmem:[#allocation6 + $0x8] sm:$0xf] %v188
      %197 = vst [vmem:[#allocation6 + $0xc] sm:$0xf] %v189
    $region29: #{_scaled_mm_padded.1} parent=1 // pred_fallthru
      _
    // Predicated region
    $region30: #{_scaled_mm_padded.1} parent=1 // pred_check
      _
    $region31: #{_scaled_mm_padded.1} parent=1 // pred_check_branch
      %199 = sbr.rel (0) target = $region33
    $region32: #{_scaled_mm_padded.1} parent=1 // pred_region
      %s201 = ssub.s32 256, 256
      %202 = vsyncadd [#allocation5], %s201
      %s203 = sshll.u32 [#allocation6], 4
      %s204 = int_to_ptr.vmem [resolvable:$true] %s203
      %209 = dma.vmem_to_hbm [thread:$0]  %s204, 256, %s4, [#allocation5], 64, 64, 4
    $region33: #{_scaled_mm_padded.1} parent=1 // pred_fallthru
      _
    // Predicated region
    $region34: #{_scaled_mm_padded.1} parent=1 // pred_check
      _
    $region35: #{_scaled_mm_padded.1} parent=1 // pred_check_branch
      %211 = sbr.rel (0) target = $region37
    $region36: #{_scaled_mm_padded.1} parent=1 // pred_region
      %212 = dma.done [#allocation5], 256
    $region37: #{_scaled_mm_padded.1} parent=1 // pred_fallthru
      _
    %213 = vsyncpa [#allocation4], 1
    %214 = vsyncpa [#allocation5], 1

</llo_original>
